<compile_context>
chip_gen: v5e
topology: v5e:2x2
jax: 0.10.0
libtpu: 0.0.40
codegen_flags: <defaults>
</compile_context>

<pallas_src>
import functools

import jax
import jax.numpy as jnp
from jax.experimental import pallas as pl
from jax.experimental.pallas import tpu as pltpu

_LANES = 512          # lane-dense last dim (multiple of 128)
_TARGET_ROWS = 1024   # rows per block (multiple of 8 / 32 for int8 packing)


def _dropout_kernel(x_ref, mask_ref, o_ref, *, inv_keep_prob):
    # Pure VPU elementwise: x * mask * (1/keep_prob); compute in f32.
    x = x_ref[...].astype(jnp.float32)
    m = mask_ref[...].astype(jnp.float32)
    o_ref[...] = (x * m * inv_keep_prob).astype(o_ref.dtype)


def deterministic_dropout(x, mask, keep_prob, *, training=True):
    """Forward of DeterministicDropout: x * mask / keep_prob (training)."""
    if not training:
        return x
    if keep_prob <= 0.0:
        raise ValueError("keep_prob must be > 0")
    assert x.shape == mask.shape, "mask must match x shape"

    orig_shape = x.shape
    orig_dtype = x.dtype
    total = x.size
    inv_keep_prob = float(1.0 / keep_prob)  # Python float -> kernel literal

    # Flatten to a lane-dense 2-D slab [rows_padded, _LANES].
    rows = -(-total // _LANES)
    block_rows = min(_TARGET_ROWS, rows)          # full extent if small,
    rows_padded = -(-rows // block_rows) * block_rows  # else multiple of 1024
    pad = rows_padded * _LANES - total

    xf = x.reshape(-1)
    mf = mask.reshape(-1)
    if mf.dtype == jnp.bool_:
        mf = mf.astype(jnp.int8)  # 1-byte mask stream; cast to f32 in-kernel
    if pad:
        xf = jnp.pad(xf, (0, pad))
        mf = jnp.pad(mf, (0, pad))
    x2 = xf.reshape(rows_padded, _LANES)
    m2 = mf.reshape(rows_padded, _LANES)

    grid = (rows_padded // block_rows,)
    kernel = functools.partial(_dropout_kernel, inv_keep_prob=inv_keep_prob)

    out2 = pl.pallas_call(
        kernel,
        out_shape=jax.ShapeDtypeStruct((rows_padded, _LANES), orig_dtype),
        grid_spec=pltpu.PrefetchScalarGridSpec(
            num_scalar_prefetch=0,
            grid=grid,
            in_specs=[
                pl.BlockSpec((block_rows, _LANES), lambda i: (i, 0)),
                pl.BlockSpec((block_rows, _LANES), lambda i: (i, 0)),
            ],
            out_specs=pl.BlockSpec((block_rows, _LANES), lambda i: (i, 0)),
        ),
        compiler_params=pltpu.CompilerParams(
            dimension_semantics=("parallel",),
        ),
    )(x2, m2)

    return out2.reshape(-1)[:total].reshape(orig_shape)


if __name__ == "__main__":
    # Module config: DeterministicDropout(drop_prob=0.2) -> keep_prob = 0.8
    drop_prob = 0.2
    keep_prob = 1.0 - drop_prob

    key = jax.random.PRNGKey(0)
    kx, km = jax.random.split(key)

    # NCHW input, small shape.
    x = jax.random.normal(kx, (2, 4, 16, 16), dtype=jnp.float32)
    # Deterministic externally-provided dropout mask, kept narrow (int8).
    mask = jax.random.bernoulli(km, p=keep_prob, shape=x.shape).astype(jnp.int8)

    out = deterministic_dropout(x, mask, keep_prob, training=True)
    out = jax.block_until_ready(out)

    # Correctness check against the reference elementwise formula.
    ref = x * mask.astype(jnp.float32) / keep_prob
    assert out.shape == x.shape and out.dtype == x.dtype
    assert jnp.allclose(out, ref, atol=1e-6, rtol=1e-6)

    # Eval mode is identity.
    out_eval = deterministic_dropout(x, mask, keep_prob, training=False)
    assert jnp.array_equal(out_eval, x)

    # TODO(synk): backward pass (mask * grad / keep_prob) is handled by JAX
    # autodiff/custom_vjp outside this forward kernel; not implemented here.
    print("KERNEL_OK")
</pallas_src>

<mosaic_0001>
module attributes {stable_mosaic.version = 11 : i64} {
  func.func @_dropout_kernel(%arg0: i32, %arg1: memref<4x512xf32, #tpu.memory_space<vmem>>, %arg2: memref<4x512xi8, #tpu.memory_space<vmem>>, %arg3: memref<4x512xf32, #tpu.memory_space<vmem>>) attributes {dimension_semantics = [#tpu.dimension_semantics<parallel>], iteration_bounds = array<i64: 1>, scalar_prefetch = 0 : i64, scratch_operands = 0 : i64, tpu.core_type = #tpu.core_type<tc>, window_params = [{transform_indices = @transform_0, window_bounds = array<i64: 4, 512>}, {transform_indices = @transform_1, window_bounds = array<i64: 4, 512>}, {transform_indices = @transform_2, window_bounds = array<i64: 4, 512>}]} {
    %c0 = arith.constant 0 : index
    %c0_0 = arith.constant 0 : index
    %0 = vector.load %arg1[%c0, %c0_0] : memref<4x512xf32, #tpu.memory_space<vmem>>, vector<4x512xf32>
    %c0_1 = arith.constant 0 : index
    %c0_2 = arith.constant 0 : index
    %1 = vector.load %arg2[%c0_1, %c0_2] : memref<4x512xi8, #tpu.memory_space<vmem>>, vector<4x512xi8>
    %2 = arith.sitofp %1 : vector<4x512xi8> to vector<4x512xf32>
    %3 = arith.mulf %0, %2 : vector<4x512xf32>
    %cst = arith.constant 1.250000e+00 : f32
    %4 = vector.broadcast %cst : f32 to vector<4x512xf32>
    %5 = arith.mulf %3, %4 : vector<4x512xf32>
    %c0_3 = arith.constant 0 : index
    %c0_4 = arith.constant 0 : index
    %6 = vector.load %arg3[%c0_3, %c0_4] : memref<4x512xf32, #tpu.memory_space<vmem>>, vector<4x512xf32>
    tpu.vector_store %arg3[%c0_3, %c0_4], %5 {strides = array<i32>} : memref<4x512xf32, #tpu.memory_space<vmem>>, vector<4x512xf32>,
    return
  }
  func.func @transform_0(%arg0: i32) -> (i32, i32) {
    %c0_i32 = arith.constant 0 : i32
    %c0_i32_0 = arith.constant 0 : i32
    return %arg0, %c0_i32 : i32, i32
  }
  func.func @transform_1(%arg0: i32) -> (i32, i32) {
    %c0_i32 = arith.constant 0 : i32
    %c0_i32_0 = arith.constant 0 : i32
    return %arg0, %c0_i32 : i32, i32
  }
  func.func @transform_2(%arg0: i32) -> (i32, i32) {
    %c0_i32 = arith.constant 0 : i32
    %c0_i32_0 = arith.constant 0 : i32
    return %arg0, %c0_i32 : i32, i32
  }
}

</mosaic_0001>

<llo_original>
// kernel: tpu_custom_call.1
$region0: #{tpu_custom_call.1}
  #allocation0 [shape = 'u32[]', space=smem, size = 0x4, offset = 0x4, fixed_abs, tag = 'smem constant byte address 0x4 - core index']
  #allocation1 [shape = 'u32[72,128]{1,0:T(1,128)}', space=vmem, size = 0x9000, scoped, tag = 'internal scratch']
  %s0 = inlined_call_operand.hbm [shape: f32[4,512], index: 0, kind: input, shape index: {}]
  %s1 = inlined_call_operand.hbm [shape: s8[4,512], index: 1, kind: input, shape index: {}]
  %s2 = inlined_call_operand.hbm [shape: f32[4,512], index: 2, kind: output, shape index: {}]
  %s3 = sld [smem:[#allocation0]]
  $region26: #{tpu_custom_call.1} parent=0
    _
  %s5 = ssub.s32 1, %s3
  %s6 = scalar_select 0, %s5, %s3
  $region1: #{tpu_custom_call.1} parent=0
    #allocation2 [shape = 'u8[8192]{0}', space=vmem, size = 0x2000, scoped, tag = 'input window, operand 0, single buffered']
    #allocation3 [shape = 's32[1]{0}', space=sflag, size = 0x4, scoped, tag = 'scoped memory for tpu_custom_call.1']
    #allocation4 [shape = 's32[1]{0}', space=sflag, size = 0x4, scoped, tag = 'scoped memory for tpu_custom_call.1']
    #allocation5 [shape = 'u8[2048]{0}', space=vmem, size = 0x800, scoped, tag = 'input window, operand 1, single buffered']
    #allocation6 [shape = 's32[1]{0}', space=sflag, size = 0x4, scoped, tag = 'scoped memory for tpu_custom_call.1']
    #allocation7 [shape = 'u8[8192]{0}', space=vmem, size = 0x2000, scoped, tag = 'output window, operand 0, single buffered']
    %7 = vsyncpa [#allocation3], 0
    %8 = vsyncpa [#allocation6], 0
    %9 = vsyncpa [#allocation4], 0
    // Predicated region
    $region2: #{tpu_custom_call.1} parent=1 // pred_check
      _
    $region3: #{tpu_custom_call.1} parent=1 // pred_check_branch
      %11 = sbr.rel (0) target = $region5
    $region4: #{tpu_custom_call.1} parent=1 // pred_region
      %13 = vsyncadd [#allocation3], 0
      %s15 = sshll.u32 %s0, 4
      %s16 = int_to_ptr.hbm [resolvable:$true] %s15
      %s17 = sshll.u32 [#allocation2], 4
      %s18 = int_to_ptr.vmem [resolvable:$true] %s17
      %20 = dma.hbm_to_vmem [thread:$0]  %s16, 256, %s18, [#allocation3]
    $region5: #{tpu_custom_call.1} parent=1 // pred_fallthru
      _
    // Predicated region
    $region6: #{tpu_custom_call.1} parent=1 // pred_check
      _
    $region7: #{tpu_custom_call.1} parent=1 // pred_check_branch
      %22 = sbr.rel (0) target = $region9
    $region8: #{tpu_custom_call.1} parent=1 // pred_region
      %24 = vsyncadd [#allocation6], 0
      %s26 = sshll.u32 %s1, 4
      %s27 = int_to_ptr.hbm [resolvable:$true] %s26
      %s28 = sshll.u32 [#allocation5], 4
      %s29 = int_to_ptr.vmem [resolvable:$true] %s28
      %31 = dma.hbm_to_vmem [thread:$0]  %s27, 64, %s29, [#allocation6]
    $region9: #{tpu_custom_call.1} parent=1 // pred_fallthru
      _
    // Predicated region
    $region10: #{tpu_custom_call.1} parent=1 // pred_check
      _
    $region11: #{tpu_custom_call.1} parent=1 // pred_check_branch
      %33 = sbr.rel (0) target = $region13
    $region12: #{tpu_custom_call.1} parent=1 // pred_region
      %35 = dma.done [#allocation3], 256
    $region13: #{tpu_custom_call.1} parent=1 // pred_fallthru
      _
    // Predicated region
    $region14: #{tpu_custom_call.1} parent=1 // pred_check
      _
    $region15: #{tpu_custom_call.1} parent=1 // pred_check_branch
      %37 = sbr.rel (0) target = $region17
    $region16: #{tpu_custom_call.1} parent=1 // pred_region
      %39 = dma.done [#allocation6], 64
    $region17: #{tpu_custom_call.1} parent=1 // pred_fallthru
      _
    %v40 = vld [vmem:[#allocation2] sm:$0xff]
    %v41 = vld [vmem:[#allocation2 + $0x8] sm:$0xff]
    %v42 = vld [vmem:[#allocation5] sm:$0xf]
    %v43 = vunpack.c.0.s8 %v42
    %v44 = vunpack.c.1.s8 %v42
    %v45 = vcvt.s32.f32 %v43
    %v46 = vcvt.s32.f32 %v44
    %v47 = vmul.f32 %v40, %v45
    %v48 = vmul.f32 %v41, %v46
    %v49 = vmul.f32 %v47, 1.25
    %v50 = vmul.f32 %v48, 1.25
    %51 = vst [vmem:[#allocation7] sm:$0xff] %v49
    %52 = vst [vmem:[#allocation7 + $0x8] sm:$0xff] %v50
    // Predicated region
    $region18: #{tpu_custom_call.1} parent=1 // pred_check
      _
    $region19: #{tpu_custom_call.1} parent=1 // pred_check_branch
      %54 = sbr.rel (0) target = $region21
    $region20: #{tpu_custom_call.1} parent=1 // pred_region
      %56 = vsyncadd [#allocation4], 0
      %s58 = sshll.u32 [#allocation7], 4
      %s59 = int_to_ptr.vmem [resolvable:$true] %s58
      %s60 = sshll.u32 %s2, 4
      %s61 = int_to_ptr.hbm [resolvable:$true] %s60
      %63 = dma.vmem_to_hbm [thread:$0]  %s59, 256, %s61, [#allocation4]
    $region21: #{tpu_custom_call.1} parent=1 // pred_fallthru
      _
    // Predicated region
    $region22: #{tpu_custom_call.1} parent=1 // pred_check
      _
    $region23: #{tpu_custom_call.1} parent=1 // pred_check_branch
      %65 = sbr.rel (0) target = $region25
    $region24: #{tpu_custom_call.1} parent=1 // pred_region
      %67 = dma.done [#allocation4], 256
    $region25: #{tpu_custom_call.1} parent=1 // pred_fallthru
      _
    %68 = vsyncpa [#allocation3], 1
    %69 = vsyncpa [#allocation6], 1
    %70 = vsyncpa [#allocation4], 1

</llo_original>
